<compile_context>
chip_gen: v7x
topology: tpu7x:2x2x1
jax: 0.10.0
libtpu: 0.0.40
codegen_flags: <defaults>
</compile_context>

<pallas_src>
import math

import jax
import jax.numpy as jnp
from jax import lax
from jax.experimental import pallas as pl
from jax.experimental.pallas import tpu as pltpu

_HIGH = lax.Precision.HIGHEST  # used only by the pure-JAX reference


def _cdiv(a, b):
    return -(-a // b)


def _round_up(a, b):
    return _cdiv(a, b) * b


def _vmem_capacity_bytes():
    try:
        info = pltpu.get_tpu_info()
        cap = getattr(info, "vmem_capacity_bytes", None)
        if cap:
            return int(cap)
    except Exception:
        pass
    return 64 << 20  # conservative fallback (v7x per-TC)


# ----------------------------- kernels -------------------------------------
# vecs rows: 0 = bn1 scale, 1 = bn1 shift, 2 = linear2 bias, (3 = context bias).
def _residual_block_kernel(x_ref, vecs_ref, b1_ref, w1_ref, w2_ref, o_ref, acc_ref):
    h = pl.program_id(1)

    @pl.when(h == 0)
    def _():
        acc_ref[...] = jnp.zeros_like(acc_ref)

    # bn1 + relu in f32 (VPU); cast to bf16 only at the MXU boundary.
    xr = jnp.maximum(x_ref[...] * vecs_ref[0:1, :] + vecs_ref[1:2, :], 0.0)
    t = jnp.dot(xr.astype(jnp.bfloat16), w1_ref[...],
                preferred_element_type=jnp.float32) + b1_ref[...]   # linear1 (+ folded bn2)
    t = jnp.maximum(t, 0.0)
    # TODO(synk): dropout with p > 0 not implemented (module default p=0.0 is identity).
    acc_ref[...] += jnp.dot(t.astype(jnp.bfloat16), w2_ref[...],
                            preferred_element_type=jnp.float32)     # linear2 (partial K)

    @pl.when(h == pl.num_programs(1) - 1)
    def _():
        o_ref[...] = (x_ref[...] + acc_ref[...] + vecs_ref[2:3, :]).astype(o_ref.dtype)


def _residual_block_kernel_ctx(x_ref, ctx_ref, vecs_ref, b1_ref, w1_ref, w2_ref, wc_ref,
                               o_ref, acc_ref):
    h = pl.program_id(1)

    @pl.when(h == 0)
    def _():
        acc_ref[...] = jnp.zeros_like(acc_ref)

    xr = jnp.maximum(x_ref[...] * vecs_ref[0:1, :] + vecs_ref[1:2, :], 0.0)
    t = jnp.dot(xr.astype(jnp.bfloat16), w1_ref[...],
                preferred_element_type=jnp.float32) + b1_ref[...]
    t = jnp.maximum(t, 0.0)
    acc_ref[...] += jnp.dot(t.astype(jnp.bfloat16), w2_ref[...],
                            preferred_element_type=jnp.float32)

    @pl.when(h == pl.num_programs(1) - 1)
    def _():
        gate = jnp.dot(ctx_ref[...].astype(jnp.bfloat16), wc_ref[...],
                       preferred_element_type=jnp.float32) + vecs_ref[3:4, :]
        t_full = acc_ref[...] + vecs_ref[2:3, :]
        o_ref[...] = (x_ref[...] + t_full * jax.nn.sigmoid(gate)).astype(o_ref.dtype)


# ----------------------------- wrapper --------------------------------------
def residual_block_forward(x, params, context=None, use_batch_norm=False,
                           eps=1e-3, hidden_block=None, batch_block=None):
    """x: (B, features) -> (B, features)."""
    B, F = x.shape
    f32, bf16 = jnp.float32, jnp.bfloat16

    # ---- fold eval-mode BatchNorm into per-feature scale/shift ----
    if use_batch_norm:
        s1 = params["g1"] / jnp.sqrt(params["v1"] + eps)
        sh1 = params["be1"] - params["m1"] * s1
        s2 = params["g2"] / jnp.sqrt(params["v2"] + eps)
        sh2 = params["be2"] - params["m2"] * s2
    else:
        s1 = jnp.ones((F,), f32)
        sh1 = jnp.zeros((F,), f32)
        s2 = jnp.ones((F,), f32)
        sh2 = jnp.zeros((F,), f32)

    # Lane-dense weights (in, out); bn2 folded exactly into linear1 (no nonlinearity between).
    w1 = params["w1"].T.astype(f32) * s2[None, :]
    b1 = params["b1"].astype(f32) * s2 + sh2
    w2 = params["w2"].T.astype(f32)
    b2 = params["b2"].astype(f32)

    has_ctx = context is not None
    Cc = context.shape[1] if has_ctx else 0

    # ---- generation-aware VMEM budget ----
    budget = int(_vmem_capacity_bytes() * 0.75)

    # ---- pad features (and context features) to lane width (128) ----
    Fp = max(128, _round_up(F, 128))
    Ccp = max(128, _round_up(Cc, 128)) if has_ctx else 0

    # ---- hidden tile (th): streamed bf16 weight blocks must fit half the budget ----
    if hidden_block is None:
        th = min(Fp, 512)
        while th > 128 and 8 * Fp * th > budget // 2:   # 2 dbuf blocks * Fp*th * 2 B each
            th = max(128, (th // 2 // 128) * 128)
    else:
        th = hidden_block
    th = max(128, min((th // 128) * 128, Fp))
    Fp = _round_up(Fp, th)
    grid_h = Fp // th

    # ---- batch tile (tb) from VMEM headroom ----
    Bp = _round_up(B, 8)
    n_vec = 4 if has_ctx else 3
    fixed = 8 * Fp * th                      # w1/w2 streamed bf16, double-buffered
    fixed += 2 * 8 * th * 4                  # b1 (1, th) sublane-padded, double-buffered
    fixed += 8 * Fp * 4                      # packed vecs, single-buffered (Buffered(1))
    if has_ctx:
        fixed += Ccp * Fp * 2                # wc resident bf16, single-buffered
    per_row = (2 + 2 + 1) * Fp * 4           # x dbuf + out dbuf + f32 accumulator
    if has_ctx:
        per_row += 2 * Ccp * 4               # ctx tile, double-buffered
    avail = max(budget - fixed, 8 * per_row)
    tb_max = max(8, avail // per_row)

    if batch_block is not None:
        tb = batch_block
    else:
        tb = 2048 if Fp <= 128 else (1024 if Fp <= 512 else 512)
    tb = min(tb, tb_max, Bp)
    if Bp >= 16:                              # >=2 batch tiles so v7x megacore can shard
        tb = min(tb, _round_up(_cdiv(Bp, 4 if Bp >= 64 else 2), 8))
    if tb >= 512:
        tb = (tb // 256) * 256                # MXU-friendly granularity on v6e/v7x
    tb = max(8, (tb // 8) * 8)
    Bp = _round_up(Bp, tb)
    grid_b = Bp // tb

    # ---- zero-pad operands (exactness preserved: padded rows/cols contribute 0) ----
    def pad2(a, r, c, dtype):
        out = jnp.zeros((r, c), dtype)
        return out.at[:a.shape[0], :a.shape[1]].set(a.astype(dtype))

    def pad1(v, n):
        out = jnp.zeros((n,), f32)
        return out.at[:v.shape[0]].set(v.astype(f32))

    xp = pad2(x, Bp, Fp, f32)
    w1p = pad2(w1, Fp, Fp, bf16)
    w2p = pad2(w2, Fp, Fp, bf16)
    b1p = pad1(b1, Fp).reshape(1, Fp)
    vec_rows = [pad1(s1, Fp), pad1(sh1, Fp), pad1(b2, Fp)]
    if has_ctx:
        vec_rows.append(pad1(params["bc"], Fp))
    vecs = jnp.stack(vec_rows, axis=0)                      # (n_vec, Fp) f32

    # ---- specs ----
    row_map = lambda b, h: (b, 0)
    const_map = lambda b, h: (0, 0)
    w1_map = lambda b, h: (0, h)
    w2_map = lambda b, h: (h, 0)
    b1_map = lambda b, h: (0, h)
    resident = pl.Buffered(1)                 # constant blocks: single buffer

    in_specs = [pl.BlockSpec((tb, Fp), row_map)]
    args = [xp]
    if has_ctx:
        ctxp = pad2(context, Bp, Ccp, f32)
        in_specs.append(pl.BlockSpec((tb, Ccp), row_map))
        args.append(ctxp)

    in_specs += [
        pl.BlockSpec((n_vec, Fp), const_map, pipeline_mode=resident),  # s1/sh1/b2(/bc)
        pl.BlockSpec((1, th), b1_map),                                 # b1 (hidden-tiled)
        pl.BlockSpec((Fp, th), w1_map),                                # w1 (bn2 folded)
        pl.BlockSpec((th, Fp), w2_map),                                # w2
    ]
    args += [vecs, b1p, w1p, w2p]

    if has_ctx:
        wcp = pad2(params["wc"].T.astype(f32), Ccp, Fp, bf16)
        in_specs.append(pl.BlockSpec((Ccp, Fp), const_map, pipeline_mode=resident))
        args.append(wcp)
        kernel = _residual_block_kernel_ctx
    else:
        kernel = _residual_block_kernel

    est = fixed + per_row * tb
    vmem_limit = int(min(budget, max(4 * est, 16 << 20)))

    out = pl.pallas_call(
        kernel,
        out_shape=jax.ShapeDtypeStruct((Bp, Fp), x.dtype),
        grid_spec=pltpu.PrefetchScalarGridSpec(
            num_scalar_prefetch=0,
            grid=(grid_b, grid_h),
            in_specs=in_specs,
            out_specs=pl.BlockSpec((tb, Fp), row_map),
            scratch_shapes=[pltpu.VMEM((tb, Fp), jnp.float32)],   # linear2 accumulator
        ),
        compiler_params=pltpu.CompilerParams(
            dimension_semantics=("parallel", "arbitrary"),
            vmem_limit_bytes=vmem_limit,
        ),
    )(*args)
    return out[:B, :F]


# ---------------- pure-JAX reference (module semantics, f32) ----------------
def reference_forward(x, params, context=None, use_batch_norm=False, eps=1e-3):
    def bn(h, g, b, m, v):
        return (h - m) / jnp.sqrt(v + eps) * g + b

    t = x
    if use_batch_norm:
        t = bn(t, params["g1"], params["be1"], params["m1"], params["v1"])
    t = jax.nn.relu(t)
    t = jnp.dot(t, params["w1"].T, precision=_HIGH) + params["b1"]
    if use_batch_norm:
        t = bn(t, params["g2"], params["be2"], params["m2"], params["v2"])
    t = jax.nn.relu(t)
    t = jnp.dot(t, params["w2"].T, precision=_HIGH) + params["b2"]
    if context is not None:
        gate = jnp.dot(context, params["wc"].T, precision=_HIGH) + params["bc"]
        t = t * jax.nn.sigmoid(gate)
    return x + t


def make_params(key, features, context_features=None, zero_initialization=True):
    ks = jax.random.split(key, 14)
    lim = 1.0 / math.sqrt(features)
    p = {
        "w1": jax.random.uniform(ks[0], (features, features), jnp.float32, -lim, lim),
        "b1": jax.random.uniform(ks[1], (features,), jnp.float32, -lim, lim),
    }
    w2_lim = 1e-3 if zero_initialization else lim
    p["w2"] = jax.random.uniform(ks[2], (features, features), jnp.float32, -w2_lim, w2_lim)
    p["b2"] = jax.random.uniform(ks[3], (features,), jnp.float32, -w2_lim, w2_lim)
    if context_features is not None:
        limc = 1.0 / math.sqrt(context_features)
        p["wc"] = jax.random.uniform(ks[4], (features, context_features), jnp.float32, -limc, limc)
        p["bc"] = jax.random.uniform(ks[5], (features,), jnp.float32, -limc, limc)
    # Eval-mode BatchNorm1d parameters / running statistics.
    p["g1"] = jax.random.normal(ks[6], (features,), jnp.float32) * 0.1 + 1.0
    p["be1"] = jax.random.normal(ks[7], (features,), jnp.float32) * 0.1
    p["m1"] = jax.random.normal(ks[8], (features,), jnp.float32) * 0.1
    p["v1"] = jnp.abs(jax.random.normal(ks[9], (features,), jnp.float32)) * 0.1 + 0.5
    p["g2"] = jax.random.normal(ks[10], (features,), jnp.float32) * 0.1 + 1.0
    p["be2"] = jax.random.normal(ks[11], (features,), jnp.float32) * 0.1
    p["m2"] = jax.random.normal(ks[12], (features,), jnp.float32) * 0.1
    p["v2"] = jnp.abs(jax.random.normal(ks[13], (features,), jnp.float32)) * 0.1 + 0.5
    return p


if __name__ == "__main__":
    key = jax.random.PRNGKey(0)
    kx1, kp1, kx2, kc2, kp2 = jax.random.split(key, 5)

    # Config 1: module defaults (no batch norm, no context, dropout p=0), tiny shapes.
    B1, F1 = 8, 32
    x1 = jax.random.normal(kx1, (B1, F1), jnp.float32)
    p1 = make_params(kp1, F1, None, zero_initialization=False)
    out1 = jax.block_until_ready(residual_block_forward(x1, p1))
    ref1 = reference_forward(x1, p1)
    assert out1.shape == (B1, F1)
    # bf16 matmul inputs with f32 accumulation -> loosened tolerance vs f32 reference.
    assert jnp.allclose(out1, ref1, atol=2e-2, rtol=2e-2), "plain path mismatch"

    # Config 2: eval-mode batch norm + context gating (GLU); exercises the hidden-axis
    # accumulator (grid_h=2) and multiple batch tiles (grid_b=2).
    B2, F2, C2 = 48, 256, 16
    x2 = jax.random.normal(kx2, (B2, F2), jnp.float32)
    c2 = jax.random.normal(kc2, (B2, C2), jnp.float32)
    p2 = make_params(kp2, F2, C2, zero_initialization=False)
    out2 = jax.block_until_ready(
        residual_block_forward(x2, p2, context=c2, use_batch_norm=True, hidden_block=128))
    ref2 = reference_forward(x2, p2, context=c2, use_batch_norm=True)
    assert out2.shape == (B2, F2)
    assert jnp.allclose(out2, ref2, atol=2e-2, rtol=2e-2), "context/BN path mismatch"

    print("KERNEL_OK")
</pallas_src>

<mosaic_0001>
module attributes {stable_mosaic.version = 11 : i64} {
  func.func @_residual_block_kernel(%arg0: i32, %arg1: i32, %arg2: memref<8x128xf32, #tpu.memory_space<vmem>>, %arg3: memref<3x128xf32, #tpu.memory_space<vmem>>, %arg4: memref<1x128xf32, #tpu.memory_space<vmem>>, %arg5: memref<128x128xbf16, #tpu.memory_space<vmem>>, %arg6: memref<128x128xbf16, #tpu.memory_space<vmem>>, %arg7: memref<8x128xf32, #tpu.memory_space<vmem>>, %arg8: memref<8x128xf32, #tpu.memory_space<vmem>>) attributes {dimension_semantics = [#tpu.dimension_semantics<parallel>, #tpu.dimension_semantics<arbitrary>], iteration_bounds = array<i64: 1, 1>, scalar_prefetch = 0 : i64, scratch_operands = 1 : i64, tpu.core_type = #tpu.core_type<tc>, window_params = [{transform_indices = @transform_0, window_bounds = array<i64: 8, 128>}, {pipeline_mode = #tpu.pipeline_mode<synchronous>, transform_indices = @transform_1, window_bounds = array<i64: 3, 128>}, {transform_indices = @transform_2, window_bounds = array<i64: 1, 128>}, {transform_indices = @transform_3, window_bounds = array<i64: 128, 128>}, {transform_indices = @transform_4, window_bounds = array<i64: 128, 128>}, {transform_indices = @transform_5, window_bounds = array<i64: 8, 128>}]} {
    %c0_i32 = arith.constant 0 : i32
    %0 = arith.cmpi eq, %arg1, %c0_i32 : i32
    %1 = arith.extui %0 : i1 to i32
    %c0_i32_0 = arith.constant 0 : i32
    %2 = arith.cmpi ne, %1, %c0_i32_0 : i32
    scf.if %2 {
      %cst_20 = arith.constant 0.000000e+00 : f32
      %29 = vector.broadcast %cst_20 : f32 to vector<8x128xf32>
      %c0_21 = arith.constant 0 : index
      %c0_22 = arith.constant 0 : index
      %30 = vector.load %arg8[%c0_21, %c0_22] : memref<8x128xf32, #tpu.memory_space<vmem>>, vector<8x128xf32>
      tpu.vector_store %arg8[%c0_21, %c0_22], %29 {strides = array<i32>} : memref<8x128xf32, #tpu.memory_space<vmem>>, vector<8x128xf32>,
    } else {
    }
    %c0 = arith.constant 0 : index
    %c0_1 = arith.constant 0 : index
    %3 = vector.load %arg2[%c0, %c0_1] : memref<8x128xf32, #tpu.memory_space<vmem>>, vector<8x128xf32>
    %c0_2 = arith.constant 0 : index
    %c0_3 = arith.constant 0 : index
    %4 = vector.load %arg3[%c0_2, %c0_3] : memref<3x128xf32, #tpu.memory_space<vmem>>, vector<1x128xf32>
    %5 = vector.broadcast %4 : vector<1x128xf32> to vector<8x128xf32>
    %6 = arith.mulf %3, %5 : vector<8x128xf32>
    %c1 = arith.constant 1 : index
    %c0_4 = arith.constant 0 : index
    %7 = vector.load %arg3[%c1, %c0_4] : memref<3x128xf32, #tpu.memory_space<vmem>>, vector<1x128xf32>
    %8 = vector.broadcast %7 : vector<1x128xf32> to vector<8x128xf32>
    %9 = arith.addf %6, %8 : vector<8x128xf32>
    %cst = arith.constant 0.000000e+00 : f32
    %10 = vector.broadcast %cst : f32 to vector<8x128xf32>
    %11 = arith.maximumf %9, %10 : vector<8x128xf32>
    %12 = arith.truncf %11 : vector<8x128xf32> to vector<8x128xbf16>
    %c0_5 = arith.constant 0 : index
    %c0_6 = arith.constant 0 : index
    %13 = vector.load %arg5[%c0_5, %c0_6] : memref<128x128xbf16, #tpu.memory_space<vmem>>, vector<128x128xbf16>
    %cst_7 = arith.constant dense<0.000000e+00> : vector<8x128xf32>
    %14 = tpu.matmul %12, %13, %cst_7 {dimension_numbers = #tpu.dot_dimension_numbers<[1], [0], [0], [1], [0, 0, 1, 1], [], []>} : vector<8x128xbf16>, vector<128x128xbf16>, vector<8x128xf32> -> vector<8x128xf32>
    %c0_8 = arith.constant 0 : index
    %c0_9 = arith.constant 0 : index
    %15 = vector.load %arg4[%c0_8, %c0_9] : memref<1x128xf32, #tpu.memory_space<vmem>>, vector<1x128xf32>
    %16 = vector.broadcast %15 : vector<1x128xf32> to vector<8x128xf32>
    %17 = arith.addf %14, %16 : vector<8x128xf32>
    %cst_10 = arith.constant 0.000000e+00 : f32
    %18 = vector.broadcast %cst_10 : f32 to vector<8x128xf32>
    %19 = arith.maximumf %17, %18 : vector<8x128xf32>
    %c0_11 = arith.constant 0 : index
    %c0_12 = arith.constant 0 : index
    %20 = vector.load %arg8[%c0_11, %c0_12] : memref<8x128xf32, #tpu.memory_space<vmem>>, vector<8x128xf32>
    %21 = arith.truncf %19 : vector<8x128xf32> to vector<8x128xbf16>
    %c0_13 = arith.constant 0 : index
    %c0_14 = arith.constant 0 : index
    %22 = vector.load %arg6[%c0_13, %c0_14] : memref<128x128xbf16, #tpu.memory_space<vmem>>, vector<128x128xbf16>
    %cst_15 = arith.constant dense<0.000000e+00> : vector<8x128xf32>
    %23 = tpu.matmul %21, %22, %cst_15 {dimension_numbers = #tpu.dot_dimension_numbers<[1], [0], [0], [1], [0, 0, 1, 1], [], []>} : vector<8x128xbf16>, vector<128x128xbf16>, vector<8x128xf32> -> vector<8x128xf32>
    %24 = arith.addf %20, %23 : vector<8x128xf32>
    %c0_16 = arith.constant 0 : index
    %c0_17 = arith.constant 0 : index
    %25 = vector.load %arg8[%c0_16, %c0_17] : memref<8x128xf32, #tpu.memory_space<vmem>>, vector<8x128xf32>
    tpu.vector_store %arg8[%c0_16, %c0_17], %24 {strides = array<i32>} : memref<8x128xf32, #tpu.memory_space<vmem>>, vector<8x128xf32>,
    %c0_i32_18 = arith.constant 0 : i32
    %26 = arith.cmpi eq, %arg1, %c0_i32_18 : i32
    %27 = arith.extui %26 : i1 to i32
    %c0_i32_19 = arith.constant 0 : i32
    %28 = arith.cmpi ne, %27, %c0_i32_19 : i32
    scf.if %28 {
      %c0_20 = arith.constant 0 : index
      %c0_21 = arith.constant 0 : index
      %29 = vector.load %arg2[%c0_20, %c0_21] : memref<8x128xf32, #tpu.memory_space<vmem>>, vector<8x128xf32>
      %c0_22 = arith.constant 0 : index
      %c0_23 = arith.constant 0 : index
      %30 = vector.load %arg8[%c0_22, %c0_23] : memref<8x128xf32, #tpu.memory_space<vmem>>, vector<8x128xf32>
      %31 = arith.addf %29, %30 : vector<8x128xf32>
      %c2 = arith.constant 2 : index
      %c0_24 = arith.constant 0 : index
      %32 = vector.load %arg3[%c2, %c0_24] : memref<3x128xf32, #tpu.memory_space<vmem>>, vector<1x128xf32>
      %33 = vector.broadcast %32 : vector<1x128xf32> to vector<8x128xf32>
      %34 = arith.addf %31, %33 : vector<8x128xf32>
      %c0_25 = arith.constant 0 : index
      %c0_26 = arith.constant 0 : index
      %35 = vector.load %arg7[%c0_25, %c0_26] : memref<8x128xf32, #tpu.memory_space<vmem>>, vector<8x128xf32>
      tpu.vector_store %arg7[%c0_25, %c0_26], %34 {strides = array<i32>} : memref<8x128xf32, #tpu.memory_space<vmem>>, vector<8x128xf32>,
    } else {
    }
    return
  }
  func.func @transform_0(%arg0: i32, %arg1: i32) -> (i32, i32) {
    %c0_i32 = arith.constant 0 : i32
    %c0_i32_0 = arith.constant 0 : i32
    return %arg0, %c0_i32 : i32, i32
  }
  func.func @transform_1(%arg0: i32, %arg1: i32) -> (i32, i32) {
    %c0_i32 = arith.constant 0 : i32
    %c0_i32_0 = arith.constant 0 : i32
    %c0_i32_1 = arith.constant 0 : i32
    return %c0_i32, %c0_i32_0 : i32, i32
  }
  func.func @transform_2(%arg0: i32, %arg1: i32) -> (i32, i32) {
    %c0_i32 = arith.constant 0 : i32
    %c0_i32_0 = arith.constant 0 : i32
    return %c0_i32, %arg1 : i32, i32
  }
  func.func @transform_3(%arg0: i32, %arg1: i32) -> (i32, i32) {
    %c0_i32 = arith.constant 0 : i32
    %c0_i32_0 = arith.constant 0 : i32
    return %c0_i32, %arg1 : i32, i32
  }
  func.func @transform_4(%arg0: i32, %arg1: i32) -> (i32, i32) {
    %c0_i32 = arith.constant 0 : i32
    %c0_i32_0 = arith.constant 0 : i32
    return %arg1, %c0_i32 : i32, i32
  }
  func.func @transform_5(%arg0: i32, %arg1: i32) -> (i32, i32) {
    %c0_i32 = arith.constant 0 : i32
    %c0_i32_0 = arith.constant 0 : i32
    return %arg0, %c0_i32 : i32, i32
  }
}

</mosaic_0001>

<llo_original>
// kernel: tpu_custom_call.1
$region0: #{tpu_custom_call.1}
  #allocation0 [shape = 'u32[]', space=smem, size = 0x4, offset = 0x4, fixed_abs, tag = 'smem constant byte address 0x4 - core index']
  #allocation1 [shape = 'u32[144,128]{1,0:T(1,128)}', space=vmem, size = 0x12000, scoped, tag = 'internal scratch']
  #allocation2 [shape = 'f32[8,128]{1,0:T(8,128)}', space=vmem, size = 0x1000, scoped, tag = 'scratch operand']
  %s0 = inlined_call_operand.hbm [shape: f32[8,128], index: 0, kind: input, shape index: {}]
  %s1 = inlined_call_operand.hbm [shape: f32[3,128], index: 1, kind: input, shape index: {}]
  %s2 = inlined_call_operand.vmem [shape: f32[1,128], index: 2, kind: input, shape index: {}]
  %s3 = inlined_call_operand.hbm [shape: bf16[128,128], index: 3, kind: input, shape index: {}]
  %s4 = inlined_call_operand.hbm [shape: bf16[128,128], index: 4, kind: input, shape index: {}]
  %s5 = inlined_call_operand.hbm [shape: f32[8,128], index: 5, kind: output, shape index: {}]
  %s6 = sld [smem:[#allocation0]]
  $region54: #{tpu_custom_call.1} parent=0
    _
  %s8 = ssub.s32 1, %s6
  %s9 = scalar_select 0, %s8, %s6
  $region1: #{tpu_custom_call.1} parent=0
    #allocation3 [shape = 'u8[4096]{0}', space=vmem, size = 0x1000, scoped, tag = 'input window, operand 0, single buffered']
    #allocation4 [shape = 's32[1]{0}', space=sflag, size = 0x4, scoped, tag = 'scoped memory for tpu_custom_call.1']
    #allocation5 [shape = 's32[1]{0}', space=sflag, size = 0x4, scoped, tag = 'scoped memory for tpu_custom_call.1']
    #allocation6 [shape = 'u8[2048]{0}', space=vmem, size = 0x800, scoped, tag = 'input window, operand 1, single buffered']
    #allocation7 [shape = 's32[1]{0}', space=sflag, size = 0x4, scoped, tag = 'scoped memory for tpu_custom_call.1']
    #allocation8 [shape = 'u8[32768]{0}', space=vmem, size = 0x8000, scoped, tag = 'input window, operand 3, single buffered']
    #allocation9 [shape = 'u8[32768]{0}', space=vmem, size = 0x8000, scoped, tag = 'input window, operand 4, single buffered']
    #allocation10 [shape = 's32[1]{0}', space=sflag, size = 0x4, scoped, tag = 'scoped memory for tpu_custom_call.1']
    #allocation11 [shape = 'u8[4096]{0}', space=vmem, size = 0x1000, scoped, tag = 'output window, operand 0, single buffered']
    %10 = vsyncpa [#allocation4], 0
    %11 = vsyncpa [#allocation7], 0
    %12 = vsyncpa [#allocation10], 0
    %13 = vsyncpa [#allocation5], 0
    // Predicated region
    $region2: #{tpu_custom_call.1} parent=1 // pred_check
      _
    $region3: #{tpu_custom_call.1} parent=1 // pred_check_branch
      %15 = sbr.rel (0) target = $region5
    $region4: #{tpu_custom_call.1} parent=1 // pred_region
      %s17 = ssub.s32 128, 128
      %18 = vsyncadd [#allocation4], %s17
      %s20 = sshll.u32 [#allocation3], 4
      %s21 = int_to_ptr.vmem [resolvable:$true] %s20
      %23 = dma.hbm_to_vmem [thread:$0]  %s0, 128, %s21, [#allocation4]
    $region5: #{tpu_custom_call.1} parent=1 // pred_fallthru
      _
    // Predicated region
    $region6: #{tpu_custom_call.1} parent=1 // pred_check
      _
    $region7: #{tpu_custom_call.1} parent=1 // pred_check_branch
      %25 = sbr.rel (0) target = $region9
    $region8: #{tpu_custom_call.1} parent=1 // pred_region
      %s27 = ssub.s32 64, 64
      %28 = vsyncadd [#allocation7], %s27
      %s30 = sshll.u32 [#allocation6], 4
      %s31 = int_to_ptr.vmem [resolvable:$true] %s30
      %33 = dma.hbm_to_vmem [thread:$0]  %s1, 64, %s31, [#allocation7]
    $region9: #{tpu_custom_call.1} parent=1 // pred_fallthru
      _
    // Predicated region
    $region10: #{tpu_custom_call.1} parent=1 // pred_check
      _
    $region11: #{tpu_custom_call.1} parent=1 // pred_check_branch
      %35 = sbr.rel (0) target = $region13
    $region12: #{tpu_custom_call.1} parent=1 // pred_region
      _
    $region13: #{tpu_custom_call.1} parent=1 // pred_fallthru
      _
    // Predicated region
    $region14: #{tpu_custom_call.1} parent=1 // pred_check
      _
    $region15: #{tpu_custom_call.1} parent=1 // pred_check_branch
      %37 = sbr.rel (0) target = $region17
    $region16: #{tpu_custom_call.1} parent=1 // pred_region
      %s39 = ssub.s32 1024, 1024
      %40 = vsyncadd [#allocation7], %s39
      %s41 = sshll.u32 [#allocation8], 4
      %s42 = int_to_ptr.vmem [resolvable:$true] %s41
      %47 = dma.hbm_to_vmem [thread:$0]  %s3, 1024, %s42, [#allocation7], 64, 64, 4
    $region17: #{tpu_custom_call.1} parent=1 // pred_fallthru
      _
    // Predicated region
    $region18: #{tpu_custom_call.1} parent=1 // pred_check
      _
    $region19: #{tpu_custom_call.1} parent=1 // pred_check_branch
      %49 = sbr.rel (0) target = $region21
    $region20: #{tpu_custom_call.1} parent=1 // pred_region
      %s51 = ssub.s32 1024, 1024
      %52 = vsyncadd [#allocation10], %s51
      %s53 = sshll.u32 [#allocation9], 4
      %s54 = int_to_ptr.vmem [resolvable:$true] %s53
      %59 = dma.hbm_to_vmem [thread:$0]  %s4, 1024, %s54, [#allocation10], 64, 64, 4
    $region21: #{tpu_custom_call.1} parent=1 // pred_fallthru
      _
    // Predicated region
    $region22: #{tpu_custom_call.1} parent=1 // pred_check
      _
    $region23: #{tpu_custom_call.1} parent=1 // pred_check_branch
      %61 = sbr.rel (0) target = $region25
    $region24: #{tpu_custom_call.1} parent=1 // pred_region
      %62 = dma.done [#allocation4], 128
    $region25: #{tpu_custom_call.1} parent=1 // pred_fallthru
      _
    // Predicated region
    $region26: #{tpu_custom_call.1} parent=1 // pred_check
      _
    $region27: #{tpu_custom_call.1} parent=1 // pred_check_branch
      %64 = sbr.rel (0) target = $region29
    $region28: #{tpu_custom_call.1} parent=1 // pred_region
      %65 = dma.done [#allocation7], 64
    $region29: #{tpu_custom_call.1} parent=1 // pred_fallthru
      _
    // Predicated region
    $region30: #{tpu_custom_call.1} parent=1 // pred_check
      _
    $region31: #{tpu_custom_call.1} parent=1 // pred_check_branch
      %67 = sbr.rel (0) target = $region33
    $region32: #{tpu_custom_call.1} parent=1 // pred_region
      %68 = dma.done [#allocation7], 1024
    $region33: #{tpu_custom_call.1} parent=1 // pred_fallthru
      _
    // Predicated region
    $region34: #{tpu_custom_call.1} parent=1 // pred_check
      _
    $region35: #{tpu_custom_call.1} parent=1 // pred_check_branch
      %70 = sbr.rel (0) target = $region37
    $region36: #{tpu_custom_call.1} parent=1 // pred_region
      %71 = dma.done [#allocation10], 1024
    $region37: #{tpu_custom_call.1} parent=1 // pred_fallthru
      _
    %p73 = scmp.eq.s32.totalorder 0, 0
    // Predicated region
    $region38: #{tpu_custom_call.1} parent=1 // pred_check
      %p74 = pneg %p73
    $region39: #{tpu_custom_call.1} parent=1 // pred_check_branch
      %76 = sbr.rel (%p74) target = $region41
    $region40: #{tpu_custom_call.1} parent=1 // pred_region
      %77 = vst [vmem:[#allocation2] sm:$0xff] 0.0
    $region41: #{tpu_custom_call.1} parent=1 // pred_fallthru
      _
    %v78 = vld [vmem:[#allocation3] sm:$0xff]
    %v79 = vld [vmem:[#allocation6] sm:$0x1]
    %v80 = vlaneseq
    %v81 = vshrl.u32 %v80, 7
    %v82 = vsub.s32 0, %v81
    %v83 = vrot.slane %v79, %v82
    %v84 = vmul.f32 %v78, %v83
    %v85 = vld [vmem:[#allocation6 + $0x1] sm:$0x1]
    %v86 = vlaneseq
    %v87 = vshrl.u32 %v86, 7
    %v88 = vsub.s32 0, %v87
    %v89 = vrot.slane %v85, %v88
    %v90 = vadd.f32 %v84, %v89
    %v91 = vmax.f32 %v90, 0.0
    %v92 = vpack.c.bf16 %v91, %v91
    %v93 = vld [vmem:[#allocation8] sm:$0xf]
    %v94 = vld [vmem:[#allocation8 + $0x4] sm:$0xf]
    %v95 = vld [vmem:[#allocation8 + $0x8] sm:$0xf]
    %v96 = vld [vmem:[#allocation8 + $0xc] sm:$0xf]
    %v97 = vld [vmem:[#allocation8 + $0x10] sm:$0xf]
    %v98 = vld [vmem:[#allocation8 + $0x14] sm:$0xf]
    %v99 = vld [vmem:[#allocation8 + $0x18] sm:$0xf]
    %v100 = vld [vmem:[#allocation8 + $0x1c] sm:$0xf]
    %v101 = vld [vmem:[#allocation8 + $0x20] sm:$0xf]
    %v102 = vld [vmem:[#allocation8 + $0x24] sm:$0xf]
    %v103 = vld [vmem:[#allocation8 + $0x28] sm:$0xf]
    %v104 = vld [vmem:[#allocation8 + $0x2c] sm:$0xf]
    %v105 = vld [vmem:[#allocation8 + $0x30] sm:$0xf]
    %v106 = vld [vmem:[#allocation8 + $0x34] sm:$0xf]
    %v107 = vld [vmem:[#allocation8 + $0x38] sm:$0xf]
    %v108 = vld [vmem:[#allocation8 + $0x3c] sm:$0xf]
    %v109 = vld [vmem:[%s2] sm:$0x1]
    %v111 = vlaneseq
    %v112 = vshrl.u32 %v111, 7
    %v113 = vsub.s32 0, %v112
    %v114 = vrot.slane %v109, %v113
    %v132 = vunpack.c.l.b16 %v93
    %v133 = vunpack.c.l.b16 %v94
    %v134 = vunpack.c.l.b16 %v95
    %v135 = vunpack.c.l.b16 %v96
    %v136 = vunpack.c.l.b16 %v97
    %v137 = vunpack.c.l.b16 %v98
    %v138 = vunpack.c.l.b16 %v99
    %v139 = vunpack.c.l.b16 %v100
    %v140 = vunpack.c.l.b16 %v101
    %v141 = vunpack.c.l.b16 %v102
    %v142 = vunpack.c.l.b16 %v103
    %v143 = vunpack.c.l.b16 %v104
    %v144 = vunpack.c.l.b16 %v105
    %v145 = vunpack.c.l.b16 %v106
    %v146 = vunpack.c.l.b16 %v107
    %v147 = vunpack.c.l.b16 %v108
    %v148 = vpack.c.b16 %v133, %v132
    %v149 = vpack.c.b16 %v135, %v134
    %v150 = vpack.c.b16 %v137, %v136
    %v151 = vpack.c.b16 %v139, %v138
    %v152 = vpack.c.b16 %v141, %v140
    %v153 = vpack.c.b16 %v143, %v142
    %v154 = vpack.c.b16 %v145, %v144
    %v155 = vpack.c.b16 %v147, %v146
    %164 = vmatprep.subr.bf16.mxu0 0
    %165 = vmatpush1.bf16.msra.mxu0 %v148
    %166 = vmatprep.subr.bf16.mxu0 0
    %167 = vmatpush1.bf16.msra.mxu0 %v149
    %168 = vmatprep.subr.bf16.mxu0 0
    %169 = vmatpush1.bf16.msra.mxu0 %v150
    %170 = vmatprep.subr.bf16.mxu0 0
    %171 = vmatpush1.bf16.msra.mxu0 %v151
    %172 = vmatprep.subr.bf16.mxu0 0
    %173 = vmatpush1.bf16.msra.mxu0 %v152
    %174 = vmatprep.subr.bf16.mxu0 0
    %175 = vmatpush1.bf16.msra.mxu0 %v153
    %176 = vmatprep.subr.bf16.mxu0 0
    %177 = vmatpush1.bf16.msra.mxu0 %v154
    %178 = vmatprep.subr.bf16.mxu0 0
    %179 = vmatpush1.bf16.msra.mxu0 %v155
    %180 = vmatprep.subr.bf16.mxu0 0
    %181 = vmatpush1.bf16.msra.mxu0 0
    %182 = vmatprep.subr.bf16.mxu0 0
    %183 = vmatpush1.bf16.msra.mxu0 0
    %184 = vmatprep.subr.bf16.mxu0 0
    %185 = vmatpush1.bf16.msra.mxu0 0
    %186 = vmatprep.subr.bf16.mxu0 0
    %187 = vmatpush1.bf16.msra.mxu0 0
    %188 = vmatprep.subr.bf16.mxu0 0
    %189 = vmatpush1.bf16.msra.mxu0 0
    %190 = vmatprep.subr.bf16.mxu0 0
    %191 = vmatpush1.bf16.msra.mxu0 0
    %192 = vmatprep.subr.bf16.mxu0 0
    %193 = vmatpush1.bf16.msra.mxu0 0
    %194 = vmatprep.subr.bf16.mxu0 0
    %195 = vmatpush1.bf16.msra.mxu0 0
    %196 = vmatprep.mubr.bf16.mxu0 0
    %197 = vmatmul.mubr.bf16.gmra.mrb[0].mxu0 %v92
    %v198 = vpop.f32.mrb[0].mxu0
    %v199 = vadd.f32 %v114, %v198
    %v200 = vpop.f32.mrb[0].mxu0
    %v201 = vpop.f32.mrb[0].mxu0
    %v202 = vpop.f32.mrb[0].mxu0
    %203 = vdwg.mxu0
    %v204 = vmax.f32 %v199, 0.0
    %v205 = vld [vmem:[#allocation2] sm:$0xff]
    %v206 = vpack.c.bf16 %v204, %v204
    %v207 = vld [vmem:[#allocation9] sm:$0xf]
    %v208 = vld [vmem:[#allocation9 + $0x4] sm:$0xf]
    %v209 = vld [vmem:[#allocation9 + $0x8] sm:$0xf]
    %v210 = vld [vmem:[#allocation9 + $0xc] sm:$0xf]
    %v211 = vld [vmem:[#allocation9 + $0x10] sm:$0xf]
    %v212 = vld [vmem:[#allocation9 + $0x14] sm:$0xf]
    %v213 = vld [vmem:[#allocation9 + $0x18] sm:$0xf]
    %v214 = vld [vmem:[#allocation9 + $0x1c] sm:$0xf]
    %v215 = vld [vmem:[#allocation9 + $0x20] sm:$0xf]
    %v216 = vld [vmem:[#allocation9 + $0x24] sm:$0xf]
    %v217 = vld [vmem:[#allocation9 + $0x28] sm:$0xf]
    %v218 = vld [vmem:[#allocation9 + $0x2c] sm:$0xf]
    %v219 = vld [vmem:[#allocation9 + $0x30] sm:$0xf]
    %v220 = vld [vmem:[#allocation9 + $0x34] sm:$0xf]
    %v221 = vld [vmem:[#allocation9 + $0x38] sm:$0xf]
    %v222 = vld [vmem:[#allocation9 + $0x3c] sm:$0xf]
    %v239 = vunpack.c.l.b16 %v207
    %v240 = vunpack.c.l.b16 %v208
    %v241 = vunpack.c.l.b16 %v209
    %v242 = vunpack.c.l.b16 %v210
    %v243 = vunpack.c.l.b16 %v211
    %v244 = vunpack.c.l.b16 %v212
    %v245 = vunpack.c.l.b16 %v213
    %v246 = vunpack.c.l.b16 %v214
    %v247 = vunpack.c.l.b16 %v215
    %v248 = vunpack.c.l.b16 %v216
    %v249 = vunpack.c.l.b16 %v217
    %v250 = vunpack.c.l.b16 %v218
    %v251 = vunpack.c.l.b16 %v219
    %v252 = vunpack.c.l.b16 %v220
    %v253 = vunpack.c.l.b16 %v221
    %v254 = vunpack.c.l.b16 %v222
    %v255 = vpack.c.b16 %v240, %v239
    %v256 = vpack.c.b16 %v242, %v241
    %v257 = vpack.c.b16 %v244, %v243
    %v258 = vpack.c.b16 %v246, %v245
    %v259 = vpack.c.b16 %v248, %v247
    %v260 = vpack.c.b16 %v250, %v249
    %v261 = vpack.c.b16 %v252, %v251
    %v262 = vpack.c.b16 %v254, %v253
    %271 = vmatprep.subr.bf16.mxu0 0
    %272 = vmatpush1.bf16.msra.mxu0 %v255
    %273 = vmatprep.subr.bf16.mxu0 0
    %274 = vmatpush1.bf16.msra.mxu0 %v256
    %275 = vmatprep.subr.bf16.mxu0 0
    %276 = vmatpush1.bf16.msra.mxu0 %v257
    %277 = vmatprep.subr.bf16.mxu0 0
    %278 = vmatpush1.bf16.msra.mxu0 %v258
    %279 = vmatprep.subr.bf16.mxu0 0
    %280 = vmatpush1.bf16.msra.mxu0 %v259
    %281 = vmatprep.subr.bf16.mxu0 0
    %282 = vmatpush1.bf16.msra.mxu0 %v260
    %283 = vmatprep.subr.bf16.mxu0 0
    %284 = vmatpush1.bf16.msra.mxu0 %v261
    %285 = vmatprep.subr.bf16.mxu0 0
    %286 = vmatpush1.bf16.msra.mxu0 %v262
    %287 = vmatprep.subr.bf16.mxu0 0
    %288 = vmatpush1.bf16.msra.mxu0 0
    %289 = vmatprep.subr.bf16.mxu0 0
    %290 = vmatpush1.bf16.msra.mxu0 0
    %291 = vmatprep.subr.bf16.mxu0 0
    %292 = vmatpush1.bf16.msra.mxu0 0
    %293 = vmatprep.subr.bf16.mxu0 0
    %294 = vmatpush1.bf16.msra.mxu0 0
    %295 = vmatprep.subr.bf16.mxu0 0
    %296 = vmatpush1.bf16.msra.mxu0 0
    %297 = vmatprep.subr.bf16.mxu0 0
    %298 = vmatpush1.bf16.msra.mxu0 0
    %299 = vmatprep.subr.bf16.mxu0 0
    %300 = vmatpush1.bf16.msra.mxu0 0
    %301 = vmatprep.subr.bf16.mxu0 0
    %302 = vmatpush1.bf16.msra.mxu0 0
    %303 = vmatprep.mubr.bf16.mxu0 0
    %304 = vmatmul.mubr.bf16.gmra.mrb[0].mxu0 %v206
    %v305 = vpop.f32.mrb[0].mxu0
    %v306 = vadd.f32 0.0, %v305
    %v307 = vpop.f32.mrb[0].mxu0
    %v308 = vpop.f32.mrb[0].mxu0
    %v309 = vpop.f32.mrb[0].mxu0
    %310 = vdwg.mxu0
    %v311 = vadd.f32 %v205, %v306
    %312 = vst [vmem:[#allocation2] sm:$0xff] %v311
    // Predicated region
    $region42: #{tpu_custom_call.1} parent=1 // pred_check
      %p313 = pneg %p73
    $region43: #{tpu_custom_call.1} parent=1 // pred_check_branch
      %315 = sbr.rel (%p313) target = $region45
    $region44: #{tpu_custom_call.1} parent=1 // pred_region
      %v316 = vld [vmem:[#allocation3] sm:$0xff]
      %v317 = vld [vmem:[#allocation2] sm:$0xff]
      %v318 = vadd.f32 %v316, %v317
      %v319 = vld [vmem:[#allocation6 + $0x2] sm:$0x1]
      %v320 = vlaneseq
      %v321 = vshrl.u32 %v320, 7
      %v322 = vsub.s32 0, %v321
      %v323 = vrot.slane %v319, %v322
      %v324 = vadd.f32 %v318, %v323
      %325 = vst [vmem:[#allocation11] sm:$0xff] %v324
    $region45: #{tpu_custom_call.1} parent=1 // pred_fallthru
      _
    // Predicated region
    $region46: #{tpu_custom_call.1} parent=1 // pred_check
      _
    $region47: #{tpu_custom_call.1} parent=1 // pred_check_branch
      %327 = sbr.rel (0) target = $region49
    $region48: #{tpu_custom_call.1} parent=1 // pred_region
      %s329 = ssub.s32 128, 128
      %330 = vsyncadd [#allocation5], %s329
      %s332 = sshll.u32 [#allocation11], 4
      %s333 = int_to_ptr.vmem [resolvable:$true] %s332
      %335 = dma.vmem_to_hbm [thread:$0]  %s333, 128, %s5, [#allocation5]
    $region49: #{tpu_custom_call.1} parent=1 // pred_fallthru
      _
    // Predicated region
    $region50: #{tpu_custom_call.1} parent=1 // pred_check
      _
    $region51: #{tpu_custom_call.1} parent=1 // pred_check_branch
      %337 = sbr.rel (0) target = $region53
    $region52: #{tpu_custom_call.1} parent=1 // pred_region
      %338 = dma.done [#allocation5], 128
    $region53: #{tpu_custom_call.1} parent=1 // pred_fallthru
      _
    %339 = vsyncpa [#allocation4], 1
    %340 = vsyncpa [#allocation7], 1
    %341 = vsyncpa [#allocation10], 1
    %342 = vsyncpa [#allocation5], 1

</llo_original>
